<compile_context>
chip_gen: v7x
topology: tpu7x:2x2x1
jax: 0.10.0
libtpu: 0.0.40
codegen_flags: <defaults>
</compile_context>

<pallas_src>
import jax
import jax.numpy as jnp
from jax.experimental import pallas as pl
from jax.experimental.pallas import tpu as pltpu


def _fuse_kernel(x_ref, out_ref):
    """x_ref, out_ref: (block_b, T, block_f) VMEM tiles.

    out[:, 0, :] = x[:, T-1, :] - x[:, 0, :]      (apex - onset)
    out[:, t, :] = x[:, t, :]   - x[:, t-1, :]    for t = 1..T-1
    """
    T = x_ref.shape[1]

    # Apex - onset -> output row 0 (ref-view loads, lane-dense store).
    first = x_ref[:, pl.ds(0, 1), :]
    last = x_ref[:, pl.ds(T - 1, 1), :]
    out_ref[:, pl.ds(0, 1), :] = last - first

    # Adjacent-frame diffs -> output rows 1..T-1 (single wide store).
    prev = x_ref[:, pl.ds(0, T - 1), :]
    cur = x_ref[:, pl.ds(1, T - 1), :]
    out_ref[:, pl.ds(1, T - 1), :] = cur - prev


def _pick_block_sizes(B, T, F, itemsize, target_bytes=2 * 1024 * 1024):
    """Choose (block_b, block_f) targeting ~`target_bytes` per block.

    block_f is a multiple of 128 that divides F (or the full F when F is not
    128-aligned — a full-extent block dim is always legal); block_b is the
    largest divisor of B keeping the block under the target.
    """
    if F % 128 == 0:
        bf = (target_bytes // (T * itemsize)) // 128 * 128
        bf = max(128, min(bf, F))
        while F % bf != 0:
            bf -= 128
    else:
        bf = F
    per_b = T * bf * itemsize
    bb = max(1, min(B, target_bytes // per_b))
    while B % bb != 0:
        bb -= 1
    return bb, bf


def prepare_fuse_data(x, *, block_b=None, block_f=None):
    """x: (B, T, C, H, W) float array -> (apex (B,C,H,W), diffs (B,T-1,C,H,W)).

    `block_b` / `block_f` override the auto tile sizes; when supplied they must
    divide B and F (block_f additionally a multiple of 128 unless equal to F).
    """
    B, T, C, H, W = x.shape
    F = C * H * W
    x_flat = x.reshape(B, T, F)
    itemsize = jnp.dtype(x.dtype).itemsize

    auto_bb, auto_bf = _pick_block_sizes(B, T, F, itemsize)
    bb = auto_bb if block_b is None else block_b
    bf = auto_bf if block_f is None else block_f

    grid = (B // bb, F // bf)

    fused = pl.pallas_call(
        _fuse_kernel,
        out_shape=jax.ShapeDtypeStruct((B, T, F), x.dtype),
        grid_spec=pltpu.PrefetchScalarGridSpec(
            num_scalar_prefetch=0,
            grid=grid,
            in_specs=[pl.BlockSpec((bb, T, bf), lambda b, f: (b, 0, f))],
            out_specs=pl.BlockSpec((bb, T, bf), lambda b, f: (b, 0, f)),
        ),
        compiler_params=pltpu.CompilerParams(
            # Both axes are fully independent; on v7x this lets the two
            # TensorCores split the grid.
            dimension_semantics=("parallel", "parallel"),
        ),
    )(x_flat)

    # Layout plumbing back to the PyTorch output shapes (XLA slices; these fuse
    # with downstream consumers).
    apex = fused[:, 0, :].reshape(B, C, H, W)
    diffs = fused[:, 1:, :].reshape(B, T - 1, C, H, W)
    return apex, diffs


if __name__ == "__main__":
    # Small, forward-consistent shapes: batch=2, frames=8, channels=4, 16x16.
    B, T, C, H, W = 2, 8, 4, 16, 16
    key = jax.random.PRNGKey(0)
    x = jax.random.normal(key, (B, T, C, H, W), dtype=jnp.float32)

    apex, diffs = prepare_fuse_data(x)
    apex = jax.block_until_ready(apex)
    diffs = jax.block_until_ready(diffs)

    # Pure-JAX reference check.
    apex_ref = x[:, -1, ...] - x[:, 0, ...]
    diffs_ref = x[:, 1:, ...] - x[:, :-1, ...]
    assert apex.shape == (B, C, H, W)
    assert diffs.shape == (B, T - 1, C, H, W)
    assert jnp.allclose(apex, apex_ref, atol=1e-6)
    assert jnp.allclose(diffs, diffs_ref, atol=1e-6)

    print("KERNEL_OK")
</pallas_src>

<mosaic_0001>
module attributes {stable_mosaic.version = 11 : i64} {
  func.func @_fuse_kernel(%arg0: i32, %arg1: i32, %arg2: memref<2x8x1024xf32, #tpu.memory_space<vmem>>, %arg3: memref<2x8x1024xf32, #tpu.memory_space<vmem>>) attributes {dimension_semantics = [#tpu.dimension_semantics<parallel>, #tpu.dimension_semantics<parallel>], iteration_bounds = array<i64: 1, 1>, scalar_prefetch = 0 : i64, scratch_operands = 0 : i64, tpu.core_type = #tpu.core_type<tc>, window_params = [{transform_indices = @transform_0, window_bounds = array<i64: 2, 8, 1024>}, {transform_indices = @transform_1, window_bounds = array<i64: 2, 8, 1024>}]} {
    %c0 = arith.constant 0 : index
    %c0_0 = arith.constant 0 : index
    %c0_1 = arith.constant 0 : index
    %0 = vector.load %arg2[%c0, %c0_0, %c0_1] : memref<2x8x1024xf32, #tpu.memory_space<vmem>>, vector<2x1x1024xf32>
    %c0_2 = arith.constant 0 : index
    %c7 = arith.constant 7 : index
    %c0_3 = arith.constant 0 : index
    %1 = vector.load %arg2[%c0_2, %c7, %c0_3] : memref<2x8x1024xf32, #tpu.memory_space<vmem>>, vector<2x1x1024xf32>
    %2 = arith.subf %1, %0 : vector<2x1x1024xf32>
    %c0_4 = arith.constant 0 : index
    %c0_5 = arith.constant 0 : index
    %c0_6 = arith.constant 0 : index
    %3 = vector.load %arg3[%c0_4, %c0_5, %c0_6] : memref<2x8x1024xf32, #tpu.memory_space<vmem>>, vector<2x1x1024xf32>
    tpu.vector_store %arg3[%c0_4, %c0_5, %c0_6], %2 {strides = array<i32>} : memref<2x8x1024xf32, #tpu.memory_space<vmem>>, vector<2x1x1024xf32>,
    %c0_7 = arith.constant 0 : index
    %c0_8 = arith.constant 0 : index
    %c0_9 = arith.constant 0 : index
    %4 = vector.load %arg2[%c0_7, %c0_8, %c0_9] : memref<2x8x1024xf32, #tpu.memory_space<vmem>>, vector<2x7x1024xf32>
    %c0_10 = arith.constant 0 : index
    %c1 = arith.constant 1 : index
    %c0_11 = arith.constant 0 : index
    %5 = vector.load %arg2[%c0_10, %c1, %c0_11] : memref<2x8x1024xf32, #tpu.memory_space<vmem>>, vector<2x7x1024xf32>
    %6 = arith.subf %5, %4 : vector<2x7x1024xf32>
    %c0_12 = arith.constant 0 : index
    %c1_13 = arith.constant 1 : index
    %c0_14 = arith.constant 0 : index
    %7 = vector.load %arg3[%c0_12, %c1_13, %c0_14] : memref<2x8x1024xf32, #tpu.memory_space<vmem>>, vector<2x7x1024xf32>
    tpu.vector_store %arg3[%c0_12, %c1_13, %c0_14], %6 {strides = array<i32>} : memref<2x8x1024xf32, #tpu.memory_space<vmem>>, vector<2x7x1024xf32>,
    return
  }
  func.func @transform_0(%arg0: i32, %arg1: i32) -> (i32, i32, i32) {
    %c0_i32 = arith.constant 0 : i32
    %c0_i32_0 = arith.constant 0 : i32
    return %arg0, %c0_i32, %arg1 : i32, i32, i32
  }
  func.func @transform_1(%arg0: i32, %arg1: i32) -> (i32, i32, i32) {
    %c0_i32 = arith.constant 0 : i32
    %c0_i32_0 = arith.constant 0 : i32
    return %arg0, %c0_i32, %arg1 : i32, i32, i32
  }
}

</mosaic_0001>

<llo_original>
// kernel: tpu_custom_call.1
$region0: #{tpu_custom_call.1}
  #allocation0 [shape = 'u32[]', space=smem, size = 0x4, offset = 0x4, fixed_abs, tag = 'smem constant byte address 0x4 - core index']
  #allocation1 [shape = 'u32[144,128]{1,0:T(1,128)}', space=vmem, size = 0x12000, scoped, tag = 'internal scratch']
  %s0 = inlined_call_operand.hbm [shape: f32[2,8,1024], index: 0, kind: input, shape index: {}]
  %s1 = inlined_call_operand.hbm [shape: f32[2,8,1024], index: 1, kind: output, shape index: {}]
  %s2 = sld [smem:[#allocation0]]
  $region18: #{tpu_custom_call.1} parent=0
    _
  %s4 = ssub.s32 1, %s2
  %s5 = scalar_select 0, %s4, %s2
  $region1: #{tpu_custom_call.1} parent=0
    #allocation2 [shape = 'u8[65536]{0}', space=vmem, size = 0x10000, scoped, tag = 'input window, operand 0, single buffered']
    #allocation3 [shape = 's32[1]{0}', space=sflag, size = 0x4, scoped, tag = 'scoped memory for tpu_custom_call.1']
    #allocation4 [shape = 's32[1]{0}', space=sflag, size = 0x4, scoped, tag = 'scoped memory for tpu_custom_call.1']
    #allocation5 [shape = 'u8[65536]{0}', space=vmem, size = 0x10000, scoped, tag = 'output window, operand 0, single buffered']
    %6 = vsyncpa [#allocation3], 0
    %7 = vsyncpa [#allocation4], 0
    // Predicated region
    $region2: #{tpu_custom_call.1} parent=1 // pred_check
      _
    $region3: #{tpu_custom_call.1} parent=1 // pred_check_branch
      %9 = sbr.rel (0) target = $region5
    $region4: #{tpu_custom_call.1} parent=1 // pred_region
      %s11 = ssub.s32 2048, 2048
      %12 = vsyncadd [#allocation3], %s11
      %s13 = sshll.u32 [#allocation2], 4
      %s14 = int_to_ptr.vmem [resolvable:$true] %s13
      %19 = dma.hbm_to_vmem [thread:$0]  %s0, 2048, %s14, [#allocation3], 1024, 1024, 64
    $region5: #{tpu_custom_call.1} parent=1 // pred_fallthru
      _
    // Predicated region
    $region6: #{tpu_custom_call.1} parent=1 // pred_check
      _
    $region7: #{tpu_custom_call.1} parent=1 // pred_check_branch
      %21 = sbr.rel (0) target = $region9
    $region8: #{tpu_custom_call.1} parent=1 // pred_region
      %22 = dma.done [#allocation3], 2048
    $region9: #{tpu_custom_call.1} parent=1 // pred_fallthru
      _
    %v23 = vld [vmem:[#allocation2] ss:$8 sm:$0xf]
    %v24 = vld [vmem:[#allocation2] ss:$8 sm:$0xf0]
    %v25 = vor.u32 %v23, %v24
    %s26 = scalar_lea.vmem [#allocation2], 64
    %v27 = vld [vmem:[%s26] ss:$8 sm:$0xf]
    %v28 = vld [vmem:[%s26] ss:$8 sm:$0xf0]
    %v29 = vor.u32 %v27, %v28
    %s30 = scalar_lea.vmem [#allocation2], 7
    %v31 = vld [vmem:[%s30] ss:$8 sm:$0xf]
    %v32 = vld [vmem:[%s30] ss:$8 sm:$0xf0]
    %v33 = vor.u32 %v31, %v32
    %s34 = scalar_lea.vmem [#allocation2], 71
    %v35 = vld [vmem:[%s34] ss:$8 sm:$0xf]
    %v36 = vld [vmem:[%s34] ss:$8 sm:$0xf0]
    %v37 = vor.u32 %v35, %v36
    %v38 = vsub.f32 %v33, %v25
    %v39 = vsub.f32 %v37, %v29
    %40 = vst [vmem:[#allocation5] ss:$8 sm:$0xf] %v38
    %41 = vst [vmem:[#allocation5] ss:$8 sm:$0xf0] %v38
    %s42 = scalar_lea.vmem [#allocation5], 64
    %43 = vst [vmem:[%s42] ss:$8 sm:$0xf] %v39
    %44 = vst [vmem:[%s42] ss:$8 sm:$0xf0] %v39
    %v45 = vld [vmem:[#allocation2] sm:$0x7f]
    %v46 = vld [vmem:[#allocation2 + $0x8] sm:$0x7f]
    %v47 = vld [vmem:[#allocation2 + $0x10] sm:$0x7f]
    %v48 = vld [vmem:[#allocation2 + $0x18] sm:$0x7f]
    %v49 = vld [vmem:[#allocation2 + $0x20] sm:$0x7f]
    %v50 = vld [vmem:[#allocation2 + $0x28] sm:$0x7f]
    %v51 = vld [vmem:[#allocation2 + $0x30] sm:$0x7f]
    %v52 = vld [vmem:[#allocation2 + $0x38] sm:$0x7f]
    %v53 = vld [vmem:[#allocation2 + $0x40] sm:$0x7f]
    %v54 = vld [vmem:[#allocation2 + $0x48] sm:$0x7f]
    %v55 = vld [vmem:[#allocation2 + $0x50] sm:$0x7f]
    %v56 = vld [vmem:[#allocation2 + $0x58] sm:$0x7f]
    %v57 = vld [vmem:[#allocation2 + $0x60] sm:$0x7f]
    %v58 = vld [vmem:[#allocation2 + $0x68] sm:$0x7f]
    %v59 = vld [vmem:[#allocation2 + $0x70] sm:$0x7f]
    %v60 = vld [vmem:[#allocation2 + $0x78] sm:$0x7f]
    %v61 = vld [vmem:[#allocation2] sm:$0xfe]
    %v62 = vld [vmem:[#allocation2 + $0x8] sm:$0xfe]
    %v63 = vld [vmem:[#allocation2 + $0x10] sm:$0xfe]
    %v64 = vld [vmem:[#allocation2 + $0x18] sm:$0xfe]
    %v65 = vld [vmem:[#allocation2 + $0x20] sm:$0xfe]
    %v66 = vld [vmem:[#allocation2 + $0x28] sm:$0xfe]
    %v67 = vld [vmem:[#allocation2 + $0x30] sm:$0xfe]
    %v68 = vld [vmem:[#allocation2 + $0x38] sm:$0xfe]
    %v69 = vld [vmem:[#allocation2 + $0x40] sm:$0xfe]
    %v70 = vld [vmem:[#allocation2 + $0x48] sm:$0xfe]
    %v71 = vld [vmem:[#allocation2 + $0x50] sm:$0xfe]
    %v72 = vld [vmem:[#allocation2 + $0x58] sm:$0xfe]
    %v73 = vld [vmem:[#allocation2 + $0x60] sm:$0xfe]
    %v74 = vld [vmem:[#allocation2 + $0x68] sm:$0xfe]
    %v75 = vld [vmem:[#allocation2 + $0x70] sm:$0xfe]
    %v76 = vld [vmem:[#allocation2 + $0x78] sm:$0xfe]
    %v93 = vrot.slane %v45, 7
    %v94 = vrot.slane %v46, 7
    %v95 = vrot.slane %v47, 7
    %v96 = vrot.slane %v48, 7
    %v97 = vrot.slane %v49, 7
    %v98 = vrot.slane %v50, 7
    %v99 = vrot.slane %v51, 7
    %v100 = vrot.slane %v52, 7
    %v101 = vrot.slane %v53, 7
    %v102 = vrot.slane %v54, 7
    %v103 = vrot.slane %v55, 7
    %v104 = vrot.slane %v56, 7
    %v105 = vrot.slane %v57, 7
    %v106 = vrot.slane %v58, 7
    %v107 = vrot.slane %v59, 7
    %v108 = vrot.slane %v60, 7
    %v125 = vsub.f32 %v61, %v93
    %v126 = vsub.f32 %v62, %v94
    %v127 = vsub.f32 %v63, %v95
    %v128 = vsub.f32 %v64, %v96
    %v129 = vsub.f32 %v65, %v97
    %v130 = vsub.f32 %v66, %v98
    %v131 = vsub.f32 %v67, %v99
    %v132 = vsub.f32 %v68, %v100
    %v133 = vsub.f32 %v69, %v101
    %v134 = vsub.f32 %v70, %v102
    %v135 = vsub.f32 %v71, %v103
    %v136 = vsub.f32 %v72, %v104
    %v137 = vsub.f32 %v73, %v105
    %v138 = vsub.f32 %v74, %v106
    %v139 = vsub.f32 %v75, %v107
    %v140 = vsub.f32 %v76, %v108
    %141 = vst [vmem:[#allocation5] sm:$0xfe] %v125
    %142 = vst [vmem:[#allocation5 + $0x8] sm:$0xfe] %v126
    %143 = vst [vmem:[#allocation5 + $0x10] sm:$0xfe] %v127
    %144 = vst [vmem:[#allocation5 + $0x18] sm:$0xfe] %v128
    %145 = vst [vmem:[#allocation5 + $0x20] sm:$0xfe] %v129
    %146 = vst [vmem:[#allocation5 + $0x28] sm:$0xfe] %v130
    %147 = vst [vmem:[#allocation5 + $0x30] sm:$0xfe] %v131
    %148 = vst [vmem:[#allocation5 + $0x38] sm:$0xfe] %v132
    %149 = vst [vmem:[#allocation5 + $0x40] sm:$0xfe] %v133
    %150 = vst [vmem:[#allocation5 + $0x48] sm:$0xfe] %v134
    %151 = vst [vmem:[#allocation5 + $0x50] sm:$0xfe] %v135
    %152 = vst [vmem:[#allocation5 + $0x58] sm:$0xfe] %v136
    %153 = vst [vmem:[#allocation5 + $0x60] sm:$0xfe] %v137
    %154 = vst [vmem:[#allocation5 + $0x68] sm:$0xfe] %v138
    %155 = vst [vmem:[#allocation5 + $0x70] sm:$0xfe] %v139
    %156 = vst [vmem:[#allocation5 + $0x78] sm:$0xfe] %v140
    // Predicated region
    $region10: #{tpu_custom_call.1} parent=1 // pred_check
      _
    $region11: #{tpu_custom_call.1} parent=1 // pred_check_branch
      %158 = sbr.rel (0) target = $region13
    $region12: #{tpu_custom_call.1} parent=1 // pred_region
      %s160 = ssub.s32 2048, 2048
      %161 = vsyncadd [#allocation4], %s160
      %s162 = sshll.u32 [#allocation5], 4
      %s163 = int_to_ptr.vmem [resolvable:$true] %s162
      %168 = dma.vmem_to_hbm [thread:$0]  %s163, 2048, %s1, [#allocation4], 1024, 1024, 64
    $region13: #{tpu_custom_call.1} parent=1 // pred_fallthru
      _
    // Predicated region
    $region14: #{tpu_custom_call.1} parent=1 // pred_check
      _
    $region15: #{tpu_custom_call.1} parent=1 // pred_check_branch
      %170 = sbr.rel (0) target = $region17
    $region16: #{tpu_custom_call.1} parent=1 // pred_region
      %171 = dma.done [#allocation4], 2048
    $region17: #{tpu_custom_call.1} parent=1 // pred_fallthru
      _
    %172 = vsyncpa [#allocation3], 1
    %173 = vsyncpa [#allocation4], 1

</llo_original>
